<compile_context>
chip_gen: v7x
topology: tpu7x:2x2x1
jax: 0.10.0
libtpu: 0.0.40
codegen_flags: <defaults>
</compile_context>

<pallas_src>
import functools

import jax
import jax.numpy as jnp
from jax.experimental import pallas as pl
from jax.experimental.pallas import tpu as pltpu

MARGIN1 = 0.5
MARGIN2 = 1.5
EPS = 1e-6


def _soft_contrastive_kernel(x1_ref, x2_ref, y_ref, out_ref, acc_ref, *,
                             batch, tile_b, tiles_per_core,
                             margin1, margin2, eps, inv_batch):
    i = pl.program_id(1)

    @pl.when(i == 0)
    def _init():
        acc_ref[...] = jnp.zeros_like(acc_ref)

    # Load in native dtype, upcast on the VPU (halves HBM traffic for bf16).
    x1 = x1_ref[...].astype(jnp.float32)
    x2 = x2_ref[...].astype(jnp.float32)

    diff = jnp.abs(x1 - x2)
    dist_sq = jnp.sum((diff + eps) ** 2, axis=1, keepdims=True)   # (TB, 1)
    dist = jnp.sqrt(dist_sq)

    mdist_pos = jnp.maximum(dist - margin1, 0.0)
    mdist_neg = jnp.maximum(margin2 - dist, 0.0)

    y = y_ref[...]                                                # (TB, 1) f32
    # y*pos + (1-y)*neg == neg + y*(pos - neg)   (one fewer VALU op per row)
    loss = 0.5 * (mdist_neg + y * (mdist_pos - mdist_neg))

    # Mask rows past the true batch (ragged final tile reads padded garbage).
    tile_idx = pl.program_id(0) * tiles_per_core + i
    row_ids = tile_idx * tile_b + jax.lax.broadcasted_iota(
        jnp.int32, (tile_b, 1), 0)
    loss = jnp.where(row_ids < batch, loss, 0.0)

    acc_ref[...] += loss

    @pl.when(i == pl.num_programs(1) - 1)
    def _finalize():
        partial_mean = jnp.sum(acc_ref[...]) * inv_batch
        out_ref[...] = jnp.full(out_ref.shape, partial_mean, out_ref.dtype)


def _choose_tile_b(batch, feat, itemsize):
    # Keep 2 inputs x 2 pipeline buffers x (TB, D) under ~8 MiB so double
    # buffering fits even v5e's ~16 MiB scoped-VMEM default (and v7x's 64 MiB
    # physical VMEM) without touching vmem_limit_bytes.
    budget = 8 * 1024 * 1024
    tb = budget // max(1, 4 * feat * itemsize)
    tb = max(8, min(512, tb))
    tb = (tb // 8) * 8
    rounded_b = ((batch + 7) // 8) * 8
    return min(tb, rounded_b)


def soft_contrastive_loss2(x1, x2, y, *, margin1=MARGIN1, margin2=MARGIN2,
                           eps=EPS, tile_b=None):
    """Pallas TPU implementation of SoftContrastiveLoss2.forward.

    x1, x2: (B, D) float32 / bfloat16
    y:      (B,)   0/1 labels
    returns scalar float32
    """
    batch, feat = x1.shape
    y2 = jnp.reshape(y, (batch, 1)).astype(jnp.float32)

    itemsize = jnp.dtype(x1.dtype).itemsize
    tb = tile_b if tile_b is not None else _choose_tile_b(batch, feat, itemsize)
    tb = max(8, (tb // 8) * 8)
    num_tiles = -(-batch // tb)

    # Two per-core partials for dual-TensorCore chips (v7x).  Falls back to a
    # harmless size-1 leading axis when the tile count can't be split evenly.
    nc = 2 if (num_tiles >= 2 and num_tiles % 2 == 0) else 1
    tiles_per_core = num_tiles // nc

    kernel = functools.partial(
        _soft_contrastive_kernel,
        batch=batch, tile_b=tb, tiles_per_core=tiles_per_core,
        margin1=float(margin1), margin2=float(margin2), eps=float(eps),
        inv_batch=1.0 / batch)

    partials = pl.pallas_call(
        kernel,
        out_shape=jax.ShapeDtypeStruct((nc * 8, 128), jnp.float32),
        grid=(nc, tiles_per_core),
        in_specs=[
            pl.BlockSpec((tb, feat), lambda c, i: (c * tiles_per_core + i, 0)),
            pl.BlockSpec((tb, feat), lambda c, i: (c * tiles_per_core + i, 0)),
            pl.BlockSpec((tb, 1), lambda c, i: (c * tiles_per_core + i, 0)),
        ],
        out_specs=pl.BlockSpec((8, 128), lambda c, i: (c, 0)),
        scratch_shapes=[pltpu.VMEM((tb, 1), jnp.float32)],
        compiler_params=pltpu.CompilerParams(
            dimension_semantics=("parallel", "arbitrary")),
    )(x1, x2, y2)

    # Each core wrote (its partial sum / B) broadcast over its (8, 128) block;
    # summing the per-core scalars gives the batch mean.
    return jnp.sum(partials[0::8, 0])


def _reference(x1, x2, y, margin1=MARGIN1, margin2=MARGIN2, eps=EPS):
    x1 = x1.astype(jnp.float32)
    x2 = x2.astype(jnp.float32)
    y = y.astype(jnp.float32)
    diff = jnp.abs(x1 - x2)
    dist = jnp.sqrt(jnp.sum((diff + eps) ** 2, axis=1))
    mdist_pos = jnp.maximum(dist - margin1, 0.0)
    mdist_neg = jnp.maximum(margin2 - dist, 0.0)
    loss = (y * mdist_pos + (1.0 - y) * mdist_neg) * 0.5
    return jnp.mean(loss)


if __name__ == "__main__":
    key = jax.random.PRNGKey(0)
    k1, k2, k3, k4, k5, k6 = jax.random.split(key, 6)

    # Small f32 case (single tile, grid (1, 1)).
    B, D = 8, 32
    x1 = jax.random.normal(k1, (B, D), dtype=jnp.float32)
    x2 = jax.random.normal(k2, (B, D), dtype=jnp.float32)
    y = jax.random.bernoulli(k3, 0.5, (B,)).astype(jnp.float32)

    out = soft_contrastive_loss2(x1, x2, y)
    jax.block_until_ready(out)
    ref = _reference(x1, x2, y)
    assert jnp.allclose(out, ref, atol=1e-5, rtol=1e-5), (out, ref)

    # bf16 case exercising batch tiling, the ragged-tile mask and the
    # two-partial ("parallel") leading axis.
    B2, D2 = 120, 128
    a1 = jax.random.normal(k4, (B2, D2), dtype=jnp.bfloat16)
    a2 = jax.random.normal(k5, (B2, D2), dtype=jnp.bfloat16)
    yb = jax.random.bernoulli(k6, 0.5, (B2,)).astype(jnp.float32)

    out2 = soft_contrastive_loss2(a1, a2, yb, tile_b=16)
    jax.block_until_ready(out2)
    ref2 = _reference(a1, a2, yb)
    assert jnp.allclose(out2, ref2, atol=1e-5, rtol=1e-5), (out2, ref2)

    print("KERNEL_OK")
</pallas_src>

<mosaic_0001>
module attributes {stable_mosaic.version = 11 : i64} {
  func.func @_soft_contrastive_kernel(%arg0: i32, %arg1: i32, %arg2: memref<8x32xf32, #tpu.memory_space<vmem>>, %arg3: memref<8x32xf32, #tpu.memory_space<vmem>>, %arg4: memref<8x1xf32, #tpu.memory_space<vmem>>, %arg5: memref<8x128xf32, #tpu.memory_space<vmem>>, %arg6: memref<8x1xf32, #tpu.memory_space<vmem>>) attributes {dimension_semantics = [#tpu.dimension_semantics<parallel>, #tpu.dimension_semantics<arbitrary>], iteration_bounds = array<i64: 1, 1>, scalar_prefetch = 0 : i64, scratch_operands = 1 : i64, tpu.core_type = #tpu.core_type<tc>, window_params = [{transform_indices = @transform_0, window_bounds = array<i64: 8, 32>}, {transform_indices = @transform_1, window_bounds = array<i64: 8, 32>}, {transform_indices = @transform_2, window_bounds = array<i64: 8, 1>}, {transform_indices = @transform_3, window_bounds = array<i64: 8, 128>}]} {
    %c0_i32 = arith.constant 0 : i32
    %0 = arith.cmpi eq, %arg1, %c0_i32 : i32
    %1 = arith.extui %0 : i1 to i32
    %c0_i32_0 = arith.constant 0 : i32
    %2 = arith.cmpi ne, %1, %c0_i32_0 : i32
    scf.if %2 {
      %cst_20 = arith.constant 0.000000e+00 : f32
      %43 = vector.broadcast %cst_20 : f32 to vector<8x1xf32>
      %c0_21 = arith.constant 0 : index
      %c0_22 = arith.constant 0 : index
      %44 = vector.load %arg6[%c0_21, %c0_22] : memref<8x1xf32, #tpu.memory_space<vmem>>, vector<8x1xf32>
      tpu.vector_store %arg6[%c0_21, %c0_22], %43 {strides = array<i32>} : memref<8x1xf32, #tpu.memory_space<vmem>>, vector<8x1xf32>,
    } else {
    }
    %c0 = arith.constant 0 : index
    %c0_1 = arith.constant 0 : index
    %3 = vector.load %arg2[%c0, %c0_1] : memref<8x32xf32, #tpu.memory_space<vmem>>, vector<8x32xf32>
    %c0_2 = arith.constant 0 : index
    %c0_3 = arith.constant 0 : index
    %4 = vector.load %arg3[%c0_2, %c0_3] : memref<8x32xf32, #tpu.memory_space<vmem>>, vector<8x32xf32>
    %5 = arith.subf %3, %4 : vector<8x32xf32>
    %6 = math.absf %5 : vector<8x32xf32>
    %cst = arith.constant 9.99999997E-7 : f32
    %7 = vector.broadcast %cst : f32 to vector<8x32xf32>
    %8 = arith.addf %6, %7 : vector<8x32xf32>
    %9 = arith.mulf %8, %8 : vector<8x32xf32>
    %cst_4 = arith.constant dense<0.000000e+00> : vector<8xf32>
    %10 = vector.multi_reduction <add>, %9, %cst_4 [1] : vector<8x32xf32> to vector<8xf32>
    %11 = vector.shape_cast %10 : vector<8xf32> to vector<8x1xf32>
    %12 = math.sqrt %11 : vector<8x1xf32>
    %cst_5 = arith.constant 5.000000e-01 : f32
    %13 = vector.broadcast %cst_5 : f32 to vector<8x1xf32>
    %14 = arith.subf %12, %13 : vector<8x1xf32>
    %cst_6 = arith.constant 0.000000e+00 : f32
    %15 = vector.broadcast %cst_6 : f32 to vector<8x1xf32>
    %16 = arith.maximumf %14, %15 : vector<8x1xf32>
    %cst_7 = arith.constant 1.500000e+00 : f32
    %17 = vector.broadcast %cst_7 : f32 to vector<8x1xf32>
    %18 = arith.subf %17, %12 : vector<8x1xf32>
    %cst_8 = arith.constant 0.000000e+00 : f32
    %19 = vector.broadcast %cst_8 : f32 to vector<8x1xf32>
    %20 = arith.maximumf %18, %19 : vector<8x1xf32>
    %c0_9 = arith.constant 0 : index
    %c0_10 = arith.constant 0 : index
    %21 = vector.load %arg4[%c0_9, %c0_10] : memref<8x1xf32, #tpu.memory_space<vmem>>, vector<8x1xf32>
    %22 = arith.subf %16, %20 : vector<8x1xf32>
    %23 = arith.mulf %21, %22 : vector<8x1xf32>
    %24 = arith.addf %20, %23 : vector<8x1xf32>
    %cst_11 = arith.constant 5.000000e-01 : f32
    %25 = vector.broadcast %cst_11 : f32 to vector<8x1xf32>
    %26 = arith.mulf %25, %24 : vector<8x1xf32>
    %c1_i32 = arith.constant 1 : i32
    %27 = arith.muli %arg0, %c1_i32 : i32
    %28 = arith.addi %27, %arg1 : i32
    %c8_i32 = arith.constant 8 : i32
    %29 = arith.muli %28, %c8_i32 : i32
    %30 = tpu.iota {dimensions = array<i32: 0>} : vector<8x1xi32>
    %31 = vector.broadcast %29 : i32 to vector<8x1xi32>
    %32 = arith.addi %31, %30 : vector<8x1xi32>
    %c8_i32_12 = arith.constant 8 : i32
    %33 = vector.broadcast %c8_i32_12 : i32 to vector<8x1xi32>
    %34 = arith.cmpi slt, %32, %33 : vector<8x1xi32>
    %cst_13 = arith.constant 0.000000e+00 : f32
    %35 = vector.broadcast %cst_13 : f32 to vector<8x1xf32>
    %36 = arith.select %34, %26, %35 : vector<8x1xi1>, vector<8x1xf32>
    %c0_14 = arith.constant 0 : index
    %c0_15 = arith.constant 0 : index
    %37 = vector.load %arg6[%c0_14, %c0_15] : memref<8x1xf32, #tpu.memory_space<vmem>>, vector<8x1xf32>
    %38 = arith.addf %37, %36 : vector<8x1xf32>
    %c0_16 = arith.constant 0 : index
    %c0_17 = arith.constant 0 : index
    %39 = vector.load %arg6[%c0_16, %c0_17] : memref<8x1xf32, #tpu.memory_space<vmem>>, vector<8x1xf32>
    tpu.vector_store %arg6[%c0_16, %c0_17], %38 {strides = array<i32>} : memref<8x1xf32, #tpu.memory_space<vmem>>, vector<8x1xf32>,
    %c0_i32_18 = arith.constant 0 : i32
    %40 = arith.cmpi eq, %arg1, %c0_i32_18 : i32
    %41 = arith.extui %40 : i1 to i32
    %c0_i32_19 = arith.constant 0 : i32
    %42 = arith.cmpi ne, %41, %c0_i32_19 : i32
    scf.if %42 {
      %c0_20 = arith.constant 0 : index
      %c0_21 = arith.constant 0 : index
      %43 = vector.load %arg6[%c0_20, %c0_21] : memref<8x1xf32, #tpu.memory_space<vmem>>, vector<8x1xf32>
      %44 = vector.shape_cast %43 : vector<8x1xf32> to vector<1x8x1xf32>
      %cst_22 = arith.constant dense<0.000000e+00> : vector<1xf32>
      %45 = vector.multi_reduction <add>, %44, %cst_22 [1, 2] : vector<1x8x1xf32> to vector<1xf32>
      %46 = vector.shape_cast %45 : vector<1xf32> to vector<1x1x1xf32>
      %47 = vector.extract %46[0, 0, 0] : f32 from vector<1x1x1xf32>
      %cst_23 = arith.constant 1.250000e-01 : f32
      %48 = arith.mulf %47, %cst_23 : f32
      %49 = vector.broadcast %48 : f32 to vector<8x128xf32>
      %c0_24 = arith.constant 0 : index
      %c0_25 = arith.constant 0 : index
      %50 = vector.load %arg5[%c0_24, %c0_25] : memref<8x128xf32, #tpu.memory_space<vmem>>, vector<8x128xf32>
      tpu.vector_store %arg5[%c0_24, %c0_25], %49 {strides = array<i32>} : memref<8x128xf32, #tpu.memory_space<vmem>>, vector<8x128xf32>,
    } else {
    }
    return
  }
  func.func @transform_0(%arg0: i32, %arg1: i32) -> (i32, i32) {
    %c1_i32 = arith.constant 1 : i32
    %0 = arith.muli %arg0, %c1_i32 : i32
    %1 = arith.addi %0, %arg1 : i32
    %c0_i32 = arith.constant 0 : i32
    %c0_i32_0 = arith.constant 0 : i32
    return %1, %c0_i32 : i32, i32
  }
  func.func @transform_1(%arg0: i32, %arg1: i32) -> (i32, i32) {
    %c1_i32 = arith.constant 1 : i32
    %0 = arith.muli %arg0, %c1_i32 : i32
    %1 = arith.addi %0, %arg1 : i32
    %c0_i32 = arith.constant 0 : i32
    %c0_i32_0 = arith.constant 0 : i32
    return %1, %c0_i32 : i32, i32
  }
  func.func @transform_2(%arg0: i32, %arg1: i32) -> (i32, i32) {
    %c1_i32 = arith.constant 1 : i32
    %0 = arith.muli %arg0, %c1_i32 : i32
    %1 = arith.addi %0, %arg1 : i32
    %c0_i32 = arith.constant 0 : i32
    %c0_i32_0 = arith.constant 0 : i32
    return %1, %c0_i32 : i32, i32
  }
  func.func @transform_3(%arg0: i32, %arg1: i32) -> (i32, i32) {
    %c0_i32 = arith.constant 0 : i32
    %c0_i32_0 = arith.constant 0 : i32
    return %arg0, %c0_i32 : i32, i32
  }
}

</mosaic_0001>

<llo_original>
// kernel: tpu_custom_call.1
$region0: #{tpu_custom_call.1}
  #allocation0 [shape = 'u32[]', space=smem, size = 0x4, offset = 0x4, fixed_abs, tag = 'smem constant byte address 0x4 - core index']
  #allocation1 [shape = 'u32[144,128]{1,0:T(1,128)}', space=vmem, size = 0x12000, scoped, tag = 'internal scratch']
  #allocation2 [shape = 'f32[8,1]{1,0:T(8,128)}', space=vmem, size = 0x1000, scoped, tag = 'scratch operand']
  %s0 = inlined_call_operand.vmem [shape: f32[8,32], index: 0, kind: input, shape index: {}]
  %s1 = inlined_call_operand.hbm [shape: f32[8,32], index: 1, kind: input, shape index: {}]
  %s2 = inlined_call_operand.vmem [shape: f32[8,1], index: 2, kind: input, shape index: {}]
  %s3 = inlined_call_operand.hbm [shape: f32[8,128], index: 3, kind: output, shape index: {}]
  %s4 = sld [smem:[#allocation0]]
  $region34: #{tpu_custom_call.1} parent=0
    _
  %s6 = ssub.s32 1, %s4
  %s7 = scalar_select 0, %s6, %s4
  $region1: #{tpu_custom_call.1} parent=0
    #allocation3 [shape = 'u8[4096]{0}', space=vmem, size = 0x1000, scoped, tag = 'input window, operand 1, single buffered']
    #allocation4 [shape = 's32[1]{0}', space=sflag, size = 0x4, scoped, tag = 'scoped memory for tpu_custom_call.1']
    #allocation5 [shape = 's32[1]{0}', space=sflag, size = 0x4, scoped, tag = 'scoped memory for tpu_custom_call.1']
    #allocation6 [shape = 'u8[4096]{0}', space=vmem, size = 0x1000, scoped, tag = 'output window, operand 0, single buffered']
    %8 = vsyncpa [#allocation4], 0
    %9 = vsyncpa [#allocation5], 0
    // Predicated region
    $region2: #{tpu_custom_call.1} parent=1 // pred_check
      _
    $region3: #{tpu_custom_call.1} parent=1 // pred_check_branch
      %11 = sbr.rel (0) target = $region5
    $region4: #{tpu_custom_call.1} parent=1 // pred_region
      %s12 = sadd.s32 0, 0
      %p13 = scmp.lt.s32.totalorder %s12, 0
      %s14 = scalar_select %p13, %s12, 0
      %s15 = smul.addr %s14, 8
      %s16 = scalar_lea.vmem %s0, %s15
      %s17 = sadd.s32 0, 0
    $region5: #{tpu_custom_call.1} parent=1 // pred_fallthru
      _
    // Predicated region
    $region6: #{tpu_custom_call.1} parent=1 // pred_check
      _
    $region7: #{tpu_custom_call.1} parent=1 // pred_check_branch
      %19 = sbr.rel (0) target = $region9
    $region8: #{tpu_custom_call.1} parent=1 // pred_region
      %s20 = sadd.s32 0, 0
      %s22 = ssub.s32 128, 128
      %23 = vsyncadd [#allocation4], %s22
      %s24 = smul.addr %s20, 128
      %s25 = scalar_lea.hbm %s1, %s24
      %s27 = sshll.u32 [#allocation3], 4
      %s28 = int_to_ptr.vmem [resolvable:$true] %s27
      %30 = dma.hbm_to_vmem [thread:$0]  %s25, 128, %s28, [#allocation4]
    $region9: #{tpu_custom_call.1} parent=1 // pred_fallthru
      _
    // Predicated region
    $region10: #{tpu_custom_call.1} parent=1 // pred_check
      _
    $region11: #{tpu_custom_call.1} parent=1 // pred_check_branch
      %32 = sbr.rel (0) target = $region13
    $region12: #{tpu_custom_call.1} parent=1 // pred_region
      %s33 = sadd.s32 0, 0
      %p34 = scmp.lt.s32.totalorder %s33, 0
      %s35 = scalar_select %p34, %s33, 0
      %s36 = smul.addr %s35, 8
      %s37 = scalar_lea.vmem %s2, %s36
      %s38 = sadd.s32 0, 0
    $region13: #{tpu_custom_call.1} parent=1 // pred_fallthru
      _
    // Predicated region
    $region14: #{tpu_custom_call.1} parent=1 // pred_check
      _
    $region15: #{tpu_custom_call.1} parent=1 // pred_check_branch
      %40 = sbr.rel (0) target = $region17
    $region16: #{tpu_custom_call.1} parent=1 // pred_region
      %41 = dma.done [#allocation4], 128
    $region17: #{tpu_custom_call.1} parent=1 // pred_fallthru
      _
    %s42 = sadd.s32 0, 0
    %p43 = scmp.lt.s32.totalorder %s42, 0
    %s44 = scalar_select %p43, %s42, 0
    %s45 = smul.addr %s44, 8
    %s46 = scalar_lea.vmem %s0, %s45
    %s47 = sadd.s32 0, 0
    %p48 = scmp.lt.s32.totalorder %s47, 0
    %s49 = scalar_select %p48, %s47, 0
    %s50 = smul.addr %s49, 8
    %s51 = scalar_lea.vmem %s2, %s50
    %s52 = sadd.s32 0, 0
    %p53 = scmp.lt.s32.totalorder %s52, 0
    %s54 = scalar_select %p53, %s52, 0
    %s55 = smul.addr %s54, 8
    %s56 = scalar_lea.vmem %s0, %s55
    %s57 = sadd.s32 0, 0
    %s58 = sadd.s32 0, 0
    %s59 = sadd.s32 0, 0
    %p60 = scmp.lt.s32.totalorder %s59, 0
    %s61 = scalar_select %p60, %s59, 0
    %s62 = smul.addr %s61, 8
    %s63 = scalar_lea.vmem %s2, %s62
    %s64 = sadd.s32 0, 0
    %p65 = scmp.eq.s32.totalorder 0, 0
    // Predicated region
    $region18: #{tpu_custom_call.1} parent=1 // pred_check
      %p66 = pneg %p65
    $region19: #{tpu_custom_call.1} parent=1 // pred_check_branch
      %68 = sbr.rel (%p66) target = $region21
    $region20: #{tpu_custom_call.1} parent=1 // pred_region
      %vm69 = vcmask 7168
      %70 = vst.msk [vmem:[#allocation2] sm:$0xff] %vm69, 0.0
    $region21: #{tpu_custom_call.1} parent=1 // pred_fallthru
      _
    %v71 = vld [vmem:[%s56] sm:$0xff]
    %v72 = vld [vmem:[#allocation3] sm:$0xff]
    %v73 = vsub.f32 %v71, %v72
    %v74 = vand.u32 2147483647, %v73
    %v75 = vadd.f32 %v74, 1e-06
    %v76 = vmul.f32 %v75, %v75
    %vm77 = vcmask 261120
    %v78 = vsel %vm77, %v76, 0.0
    %79 = vadd.xlane.f32.xlu0 %v78
    %v80 = vpop.xlane.xlu0 %79
    %v81 = vrsqrt.pop %v80
    %v82 = vmul.f32 %v80, %v81
    %vm83 = vcmp.eq.f32.partialorder %v80, inf
    %v84 = vsel %vm83, %v80, %v82
    %vm85 = vcmp.eq.f32.partialorder %v80, 0.0
    %v86 = vand.u32 %v80, 2147483648
    %v87 = vsel %vm85, %v86, %v84
    %v88 = vsub.f32 %v87, 0.5
    %v89 = vmax.f32 %v88, 0.0
    %v90 = vsub.f32 1.5, %v87
    %v91 = vmax.f32 %v90, 0.0
    %v92 = vld [vmem:[%s63] sm:$0xff]
    %v93 = vsub.f32 %v89, %v91
    %v94 = vmul.f32 %v92, %v93
    %v95 = vadd.f32 %v91, %v94
    %v96 = vmul.f32 %v95, 0.5
    %s97 = sadd.s32 0, 0
    %s98 = smul.u32 %s97, 8
    %v99 = vlaneseq
    %v100 = vshrl.u32 %v99, 7
    %v101 = vstv %s98
    %v102 = vadd.s32 %v101, %v100
    %vm103 = vcmp.lt.s32.totalorder %v102, 8
    %v104 = vsel %vm103, %v96, 0.0
    %v105 = vld [vmem:[#allocation2] sm:$0xff]
    %v106 = vadd.f32 %v105, %v104
    %vm107 = vcmask 7168
    %108 = vst.msk [vmem:[#allocation2] sm:$0xff] %vm107, %v106
    // Predicated region
    $region22: #{tpu_custom_call.1} parent=1 // pred_check
      %p109 = pneg %p65
    $region23: #{tpu_custom_call.1} parent=1 // pred_check_branch
      %111 = sbr.rel (%p109) target = $region25
    $region24: #{tpu_custom_call.1} parent=1 // pred_region
      %v112 = vld [vmem:[#allocation2] sm:$0xff]
      %v113 = vsel %vm107, %v112, 0.0
      %114 = vadd.xlane.f32.xlu0 %v113
      %v115 = vpop.xlane.xlu0 %114
      %v116 = vrot.slane %v115, 4
      %v117 = vadd.f32 %v115, %v116
      %v118 = vrot.slane %v117, 2
      %v119 = vadd.f32 %v117, %v118
      %v120 = vrot.slane %v119, 1
      %v121 = vadd.f32 %v119, %v120
      %s122 = vtos %v121
      %s123 = smul.f32 %s122, 0.125
      %v124 = vstv %s123
      %125 = vst [vmem:[#allocation6] sm:$0xff] %v124
    $region25: #{tpu_custom_call.1} parent=1 // pred_fallthru
      _
    // Predicated region
    $region26: #{tpu_custom_call.1} parent=1 // pred_check
      _
    $region27: #{tpu_custom_call.1} parent=1 // pred_check_branch
      %127 = sbr.rel (0) target = $region29
    $region28: #{tpu_custom_call.1} parent=1 // pred_region
      %s129 = ssub.s32 128, 128
      %130 = vsyncadd [#allocation5], %s129
      %s132 = sshll.u32 [#allocation6], 4
      %s133 = int_to_ptr.vmem [resolvable:$true] %s132
      %135 = dma.vmem_to_hbm [thread:$0]  %s133, 128, %s3, [#allocation5]
    $region29: #{tpu_custom_call.1} parent=1 // pred_fallthru
      _
    // Predicated region
    $region30: #{tpu_custom_call.1} parent=1 // pred_check
      _
    $region31: #{tpu_custom_call.1} parent=1 // pred_check_branch
      %137 = sbr.rel (0) target = $region33
    $region32: #{tpu_custom_call.1} parent=1 // pred_region
      %138 = dma.done [#allocation5], 128
    $region33: #{tpu_custom_call.1} parent=1 // pred_fallthru
      _
    %139 = vsyncpa [#allocation4], 1
    %140 = vsyncpa [#allocation5], 1

</llo_original>
